<compile_context>
chip_gen: v5e
topology: v5e:2x2
jax: 0.10.0
libtpu: 0.0.40
codegen_flags: <defaults>
</compile_context>

<pallas_src>
import functools

import jax
import jax.numpy as jnp
from jax.experimental import pallas as pl
from jax.experimental.pallas import tpu as pltpu

EPS = 1e-5  # PyTorch BatchNorm2d default


# --------------------------- Pass A: BN statistics ---------------------------
def _stats_kernel(x_ref, w_ref, b_ref, g_ref, beta_ref,
                  scale_ref, shift_ref, sum_acc, sq_acc,
                  *, n_rows, need_mask):
    i = pl.program_id(0)

    @pl.when(i == 0)
    def _():
        sum_acc[...] = jnp.zeros_like(sum_acc)
        sq_acc[...] = jnp.zeros_like(sq_acc)

    x = x_ref[...]                                           # (br, Cin)
    y = jnp.dot(x, w_ref[...], preferred_element_type=jnp.float32) + b_ref[...]
    y = jnp.maximum(y, 0.0)                                  # ReLU

    if need_mask:                                            # boundary-tile padding
        br = x_ref.shape[0]
        rows = i * br + jax.lax.broadcasted_iota(jnp.int32, (br, 1), 0)
        y = jnp.where(rows < n_rows, y, 0.0)

    sum_acc[...] += jnp.sum(y, axis=0, keepdims=True)
    sq_acc[...] += jnp.sum(y * y, axis=0, keepdims=True)

    @pl.when(i == pl.num_programs(0) - 1)
    def _():
        inv_n = 1.0 / float(n_rows)
        mean = sum_acc[...] * inv_n
        var = jnp.maximum(sq_acc[...] * inv_n - mean * mean, 0.0)   # clamp
        scale = g_ref[...] * jax.lax.rsqrt(var + EPS)
        scale_ref[...] = scale
        shift_ref[...] = beta_ref[...] - mean * scale


# --------------------- Pass B: conv + ReLU + pool + affine --------------------
def _apply_kernel(xh0_ref, xh1_ref, wbd_ref, b2_ref, scale_ref, shift_ref,
                  o_ref, *, cout):
    bt, w2, k2 = xh0_ref.shape              # (bt, W2, 2*Cin)
    rows = bt * w2
    wbd = wbd_ref[...]                      # (2*Cin, 2*Cout) block-diagonal
    b2 = b2_ref[...]                        # (1, 2*Cout)

    def conv_relu_wpool(v):
        # One MXU matmul computes both dw taps of the 1x1 conv at once.
        y = jnp.dot(v.reshape(rows, k2), wbd,
                    preferred_element_type=jnp.float32) + b2
        y = jnp.maximum(y, 0.0)             # ReLU must precede pooling
        return y[:, :cout] + y[:, cout:]    # sum over dw = 0, 1

    pooled = 0.25 * (conv_relu_wpool(xh0_ref[...]) +      # dh = 0
                     conv_relu_wpool(xh1_ref[...]))       # dh = 1
    # BN affine after pooling (identical: per-channel affine commutes with mean)
    o_ref[...] = pooled * scale_ref[...] + shift_ref[...]


# --------------------------------- wrapper -----------------------------------
def transition_layer_block(x, conv_w, conv_b, bn_gamma, bn_beta,
                           *, row_tile=None, t_tile=None):
    """x: (N, Cin, H, W) NCHW float32. Returns (N, Cout, H//2, W//2) NCHW."""
    N, Cin, H, W = x.shape
    Cout = conv_w.shape[0]
    H2, W2 = H // 2, W // 2
    NR = N * H * W          # rows entering BN statistics (full H x W, like PyTorch)
    NH2 = N * H2
    R4 = N * H2 * W2        # pooled output rows

    # Single layout transpose (NCHW -> NHWC); everything else is free reshapes
    # plus BlockSpec-driven DMA gathers.
    x_nhwc = jnp.transpose(x, (0, 2, 3, 1)).astype(jnp.float32)    # (N, H, W, Cin)
    x_flat = x_nhwc.reshape(NR, Cin)                               # stats pass
    x_even = x_nhwc if (H % 2 == 0 and W % 2 == 0) else x_nhwc[:, :2 * H2, :2 * W2, :]
    x_q = x_even.reshape(NH2, 2, W2, 2 * Cin)                      # (n*h2, dh, w2, dw*Cin)

    w_mat = conv_w.reshape(Cout, Cin).T.astype(jnp.float32)        # (Cin, Cout)
    b_row = conv_b.reshape(1, Cout).astype(jnp.float32)
    g_row = bn_gamma.reshape(1, Cout).astype(jnp.float32)
    be_row = bn_beta.reshape(1, Cout).astype(jnp.float32)

    # Block-diagonal conv weight + duplicated bias: both dw taps per matmul.
    wbd = jnp.zeros((2 * Cin, 2 * Cout), jnp.float32)
    wbd = wbd.at[:Cin, :Cout].set(w_mat)
    wbd = wbd.at[Cin:, Cout:].set(w_mat)
    b2 = jnp.concatenate([b_row, b_row], axis=1)                   # (1, 2*Cout)

    # ------------------------------ tile sizes -------------------------------
    # Pass A: row tile over (NR, Cin); multiple of 8 (or full), VMEM-capped.
    if row_tile is None:
        br = min(NR, 2048, max(8, (4 * 1024 * 1024) // max(1, Cin * 4)))
    else:
        br = min(int(row_tile), NR)
    if br < NR and br % 8 != 0:
        br = max(8, (br // 8) * 8)
    grid_a = pl.cdiv(NR, br)

    # Pass B: tile over the N*H2 axis; output rows per tile = bt*W2, multiple
    # of 8 (or the full extent), VMEM-capped for v7x's smaller VMEM.
    if t_tile is None:
        bytes_per_t = W2 * 2 * Cin * 4
        bt = min(NH2, max(1, 1024 // max(1, W2)),
                 max(1, (4 * 1024 * 1024) // max(1, bytes_per_t)))
    else:
        bt = min(int(t_tile), NH2)
    if bt < NH2:
        while bt < NH2 and (bt * W2) % 8 != 0:
            bt += 1
    if (bt * W2) % 8 != 0:
        bt = NH2
    grid_b = pl.cdiv(NH2, bt)

    # Explicit VMEM budgets (double-buffered blocks + headroom), review item.
    blk_a = br * Cin * 4 + (Cin * Cout + 8 * Cout) * 4
    vmem_a = int(min(100 * 2**20, max(32 * 2**20, 4 * blk_a)))
    blk_b = 2 * bt * W2 * 2 * Cin * 4 + bt * W2 * Cout * 4 \
        + (2 * Cin * 2 * Cout + 6 * Cout) * 4
    vmem_b = int(min(100 * 2**20, max(32 * 2**20, 4 * blk_b)))

    cost_a = pl.CostEstimate(flops=2 * NR * Cin * Cout,
                             transcendentals=Cout,
                             bytes_accessed=NR * Cin * 4 + (Cin * Cout + 6 * Cout) * 4)
    cost_b = pl.CostEstimate(flops=R4 * (2 * (2 * Cin) * (2 * Cout) + 6 * Cout),
                             transcendentals=0,
                             bytes_accessed=4 * R4 * Cin * 4 + R4 * Cout * 4)

    # ------------------------------- Pass A ----------------------------------
    scale, shift = pl.pallas_call(
        functools.partial(_stats_kernel, n_rows=NR, need_mask=(NR % br) != 0),
        out_shape=(jax.ShapeDtypeStruct((1, Cout), jnp.float32),
                   jax.ShapeDtypeStruct((1, Cout), jnp.float32)),
        grid_spec=pltpu.PrefetchScalarGridSpec(
            num_scalar_prefetch=0,
            grid=(grid_a,),
            in_specs=[
                pl.BlockSpec((br, Cin), lambda i: (i, 0)),
                pl.BlockSpec((Cin, Cout), lambda i: (0, 0)),
                pl.BlockSpec((1, Cout), lambda i: (0, 0)),
                pl.BlockSpec((1, Cout), lambda i: (0, 0)),
                pl.BlockSpec((1, Cout), lambda i: (0, 0)),
            ],
            out_specs=(
                pl.BlockSpec((1, Cout), lambda i: (0, 0)),
                pl.BlockSpec((1, Cout), lambda i: (0, 0)),
            ),
            scratch_shapes=[pltpu.VMEM((1, Cout), jnp.float32),
                            pltpu.VMEM((1, Cout), jnp.float32)]),
        compiler_params=pltpu.CompilerParams(
            dimension_semantics=("arbitrary",),          # reduction axis
            vmem_limit_bytes=vmem_a),
        cost_estimate=cost_a,
    )(x_flat, w_mat, b_row, g_row, be_row)

    # ------------------------------- Pass B ----------------------------------
    out_flat = pl.pallas_call(
        functools.partial(_apply_kernel, cout=Cout),
        out_shape=jax.ShapeDtypeStruct((R4, Cout), jnp.float32),
        grid_spec=pltpu.PrefetchScalarGridSpec(
            num_scalar_prefetch=0,
            grid=(grid_b,),
            in_specs=[
                # Same array passed twice; BlockSpec index maps pin dh = 0 / 1.
                pl.BlockSpec((bt, None, W2, 2 * Cin), lambda i: (i, 0, 0, 0)),
                pl.BlockSpec((bt, None, W2, 2 * Cin), lambda i: (i, 1, 0, 0)),
                pl.BlockSpec((2 * Cin, 2 * Cout), lambda i: (0, 0)),
                pl.BlockSpec((1, 2 * Cout), lambda i: (0, 0)),
                pl.BlockSpec((1, Cout), lambda i: (0, 0)),
                pl.BlockSpec((1, Cout), lambda i: (0, 0)),
            ],
            out_specs=pl.BlockSpec((bt * W2, Cout), lambda i: (i, 0))),
        compiler_params=pltpu.CompilerParams(
            dimension_semantics=("parallel",),           # megacore split on v7x
            vmem_limit_bytes=vmem_b),
        cost_estimate=cost_b,
    )(x_q, x_q, wbd, b2, scale, shift)

    out = out_flat.reshape(N, H2, W2, Cout)              # rows were (n, h2, w2)
    return jnp.transpose(out, (0, 3, 1, 2))              # -> NCHW


# ------------------------------ pure-JAX reference ----------------------------
def _reference(x, conv_w, conv_b, gamma, beta):
    y = jax.lax.conv_general_dilated(
        x, conv_w, window_strides=(1, 1), padding="VALID",
        dimension_numbers=("NCHW", "OIHW", "NCHW"))
    y = y + conv_b.reshape(1, -1, 1, 1)
    y = jnp.maximum(y, 0.0)
    mean = jnp.mean(y, axis=(0, 2, 3), keepdims=True)
    var = jnp.mean((y - mean) ** 2, axis=(0, 2, 3), keepdims=True)
    y = (y - mean) / jnp.sqrt(var + EPS) * gamma.reshape(1, -1, 1, 1) \
        + beta.reshape(1, -1, 1, 1)
    N, C, H, W = y.shape
    y = y[:, :, :(H // 2) * 2, :(W // 2) * 2]
    return y.reshape(N, C, H // 2, 2, W // 2, 2).mean(axis=(3, 5))


if __name__ == "__main__":
    N, Cin, Cout, H, W = 2, 4, 8, 16, 16

    key = jax.random.PRNGKey(0)
    k_x, k_w, k_b, k_g, k_be = jax.random.split(key, 5)

    x = jax.random.normal(k_x, (N, Cin, H, W), dtype=jnp.float32)
    conv_w = jax.random.normal(k_w, (Cout, Cin, 1, 1), dtype=jnp.float32) * 0.5
    conv_b = jax.random.normal(k_b, (Cout,), dtype=jnp.float32) * 0.1
    bn_gamma = 1.0 + 0.1 * jax.random.normal(k_g, (Cout,), dtype=jnp.float32)
    bn_beta = 0.1 * jax.random.normal(k_be, (Cout,), dtype=jnp.float32)

    ref = _reference(x, conv_w, conv_b, bn_gamma, bn_beta)

    # Default (large) tiles.
    out = transition_layer_block(x, conv_w, conv_b, bn_gamma, bn_beta)
    out = jax.block_until_ready(out)
    assert out.shape == (N, Cout, H // 2, W // 2)
    assert jnp.allclose(out, ref, atol=1e-4, rtol=1e-4)

    # Small forced tiles: exercises multi-step grids (stats accumulation across
    # grid steps and parallel pooled-row tiles).
    out2 = transition_layer_block(x, conv_w, conv_b, bn_gamma, bn_beta,
                                  row_tile=128, t_tile=4)
    out2 = jax.block_until_ready(out2)
    assert jnp.allclose(out2, ref, atol=1e-4, rtol=1e-4)

    print("KERNEL_OK")
</pallas_src>

<mosaic_0001>
module attributes {stable_mosaic.version = 11 : i64} {
  func.func @_stats_kernel(%arg0: i32, %arg1: memref<512x4xf32, #tpu.memory_space<vmem>>, %arg2: memref<4x8xf32, #tpu.memory_space<vmem>>, %arg3: memref<1x8xf32, #tpu.memory_space<vmem>>, %arg4: memref<1x8xf32, #tpu.memory_space<vmem>>, %arg5: memref<1x8xf32, #tpu.memory_space<vmem>>, %arg6: memref<1x8xf32, #tpu.memory_space<vmem>>, %arg7: memref<1x8xf32, #tpu.memory_space<vmem>>, %arg8: memref<1x8xf32, #tpu.memory_space<vmem>>, %arg9: memref<1x8xf32, #tpu.memory_space<vmem>>) attributes {dimension_semantics = [#tpu.dimension_semantics<arbitrary>], iteration_bounds = array<i64: 1>, scalar_prefetch = 0 : i64, scratch_operands = 2 : i64, tpu.core_type = #tpu.core_type<tc>, window_params = [{transform_indices = @transform_0, window_bounds = array<i64: 512, 4>}, {pipeline_mode = #tpu.pipeline_mode<synchronous>, transform_indices = @transform_1, window_bounds = array<i64: 4, 8>}, {pipeline_mode = #tpu.pipeline_mode<synchronous>, transform_indices = @transform_2, window_bounds = array<i64: 1, 8>}, {pipeline_mode = #tpu.pipeline_mode<synchronous>, transform_indices = @transform_3, window_bounds = array<i64: 1, 8>}, {pipeline_mode = #tpu.pipeline_mode<synchronous>, transform_indices = @transform_4, window_bounds = array<i64: 1, 8>}, {pipeline_mode = #tpu.pipeline_mode<synchronous>, transform_indices = @transform_5, window_bounds = array<i64: 1, 8>}, {pipeline_mode = #tpu.pipeline_mode<synchronous>, transform_indices = @transform_6, window_bounds = array<i64: 1, 8>}]} {
    %c0_i32 = arith.constant 0 : i32
    %0 = arith.cmpi eq, %arg0, %c0_i32 : i32
    %1 = arith.extui %0 : i1 to i32
    %c0_i32_0 = arith.constant 0 : i32
    %2 = arith.cmpi ne, %1, %c0_i32_0 : i32
    scf.if %2 {
      %cst_19 = arith.constant 0.000000e+00 : f32
      %25 = vector.broadcast %cst_19 : f32 to vector<1x8xf32>
      %c0_20 = arith.constant 0 : index
      %c0_21 = arith.constant 0 : index
      %26 = vector.load %arg8[%c0_20, %c0_21] : memref<1x8xf32, #tpu.memory_space<vmem>>, vector<1x8xf32>
      tpu.vector_store %arg8[%c0_20, %c0_21], %25 {strides = array<i32>} : memref<1x8xf32, #tpu.memory_space<vmem>>, vector<1x8xf32>,
      %cst_22 = arith.constant 0.000000e+00 : f32
      %27 = vector.broadcast %cst_22 : f32 to vector<1x8xf32>
      %c0_23 = arith.constant 0 : index
      %c0_24 = arith.constant 0 : index
      %28 = vector.load %arg9[%c0_23, %c0_24] : memref<1x8xf32, #tpu.memory_space<vmem>>, vector<1x8xf32>
      tpu.vector_store %arg9[%c0_23, %c0_24], %27 {strides = array<i32>} : memref<1x8xf32, #tpu.memory_space<vmem>>, vector<1x8xf32>,
    } else {
    }
    %c0 = arith.constant 0 : index
    %c0_1 = arith.constant 0 : index
    %3 = vector.load %arg1[%c0, %c0_1] : memref<512x4xf32, #tpu.memory_space<vmem>>, vector<512x4xf32>
    %c0_2 = arith.constant 0 : index
    %c0_3 = arith.constant 0 : index
    %4 = vector.load %arg2[%c0_2, %c0_3] : memref<4x8xf32, #tpu.memory_space<vmem>>, vector<4x8xf32>
    %cst = arith.constant dense<0.000000e+00> : vector<512x8xf32>
    %5 = tpu.matmul %3, %4, %cst {dimension_numbers = #tpu.dot_dimension_numbers<[1], [0], [0], [1], [0, 0, 1, 1], [], []>} : vector<512x4xf32>, vector<4x8xf32>, vector<512x8xf32> -> vector<512x8xf32>
    %c0_4 = arith.constant 0 : index
    %c0_5 = arith.constant 0 : index
    %6 = vector.load %arg3[%c0_4, %c0_5] : memref<1x8xf32, #tpu.memory_space<vmem>>, vector<1x8xf32>
    %7 = vector.broadcast %6 : vector<1x8xf32> to vector<512x8xf32>
    %8 = arith.addf %5, %7 : vector<512x8xf32>
    %cst_6 = arith.constant 0.000000e+00 : f32
    %9 = vector.broadcast %cst_6 : f32 to vector<512x8xf32>
    %10 = arith.maximumf %8, %9 : vector<512x8xf32>
    %c0_7 = arith.constant 0 : index
    %c0_8 = arith.constant 0 : index
    %11 = vector.load %arg8[%c0_7, %c0_8] : memref<1x8xf32, #tpu.memory_space<vmem>>, vector<1x8xf32>
    %cst_9 = arith.constant dense<0.000000e+00> : vector<8xf32>
    %12 = vector.multi_reduction <add>, %10, %cst_9 [0] : vector<512x8xf32> to vector<8xf32>
    %13 = vector.shape_cast %12 : vector<8xf32> to vector<1x8xf32>
    %14 = arith.addf %11, %13 : vector<1x8xf32>
    %c0_10 = arith.constant 0 : index
    %c0_11 = arith.constant 0 : index
    %15 = vector.load %arg8[%c0_10, %c0_11] : memref<1x8xf32, #tpu.memory_space<vmem>>, vector<1x8xf32>
    tpu.vector_store %arg8[%c0_10, %c0_11], %14 {strides = array<i32>} : memref<1x8xf32, #tpu.memory_space<vmem>>, vector<1x8xf32>,
    %c0_12 = arith.constant 0 : index
    %c0_13 = arith.constant 0 : index
    %16 = vector.load %arg9[%c0_12, %c0_13] : memref<1x8xf32, #tpu.memory_space<vmem>>, vector<1x8xf32>
    %17 = arith.mulf %10, %10 : vector<512x8xf32>
    %cst_14 = arith.constant dense<0.000000e+00> : vector<8xf32>
    %18 = vector.multi_reduction <add>, %17, %cst_14 [0] : vector<512x8xf32> to vector<8xf32>
    %19 = vector.shape_cast %18 : vector<8xf32> to vector<1x8xf32>
    %20 = arith.addf %16, %19 : vector<1x8xf32>
    %c0_15 = arith.constant 0 : index
    %c0_16 = arith.constant 0 : index
    %21 = vector.load %arg9[%c0_15, %c0_16] : memref<1x8xf32, #tpu.memory_space<vmem>>, vector<1x8xf32>
    tpu.vector_store %arg9[%c0_15, %c0_16], %20 {strides = array<i32>} : memref<1x8xf32, #tpu.memory_space<vmem>>, vector<1x8xf32>,
    %c0_i32_17 = arith.constant 0 : i32
    %22 = arith.cmpi eq, %arg0, %c0_i32_17 : i32
    %23 = arith.extui %22 : i1 to i32
    %c0_i32_18 = arith.constant 0 : i32
    %24 = arith.cmpi ne, %23, %c0_i32_18 : i32
    scf.if %24 {
      %c0_19 = arith.constant 0 : index
      %c0_20 = arith.constant 0 : index
      %25 = vector.load %arg8[%c0_19, %c0_20] : memref<1x8xf32, #tpu.memory_space<vmem>>, vector<1x8xf32>
      %cst_21 = arith.constant 0.001953125 : f32
      %26 = vector.broadcast %cst_21 : f32 to vector<1x8xf32>
      %27 = arith.mulf %25, %26 : vector<1x8xf32>
      %c0_22 = arith.constant 0 : index
      %c0_23 = arith.constant 0 : index
      %28 = vector.load %arg9[%c0_22, %c0_23] : memref<1x8xf32, #tpu.memory_space<vmem>>, vector<1x8xf32>
      %cst_24 = arith.constant 0.001953125 : f32
      %29 = vector.broadcast %cst_24 : f32 to vector<1x8xf32>
      %30 = arith.mulf %28, %29 : vector<1x8xf32>
      %31 = arith.mulf %27, %27 : vector<1x8xf32>
      %32 = arith.subf %30, %31 : vector<1x8xf32>
      %cst_25 = arith.constant 0.000000e+00 : f32
      %33 = vector.broadcast %cst_25 : f32 to vector<1x8xf32>
      %34 = arith.maximumf %32, %33 : vector<1x8xf32>
      %c0_26 = arith.constant 0 : index
      %c0_27 = arith.constant 0 : index
      %35 = vector.load %arg4[%c0_26, %c0_27] : memref<1x8xf32, #tpu.memory_space<vmem>>, vector<1x8xf32>
      %cst_28 = arith.constant 9.99999974E-6 : f32
      %36 = vector.broadcast %cst_28 : f32 to vector<1x8xf32>
      %37 = arith.addf %34, %36 : vector<1x8xf32>
      %38 = math.rsqrt %37 : vector<1x8xf32>
      %39 = arith.mulf %35, %38 : vector<1x8xf32>
      %c0_29 = arith.constant 0 : index
      %c0_30 = arith.constant 0 : index
      %40 = vector.load %arg6[%c0_29, %c0_30] : memref<1x8xf32, #tpu.memory_space<vmem>>, vector<1x8xf32>
      tpu.vector_store %arg6[%c0_29, %c0_30], %39 {strides = array<i32>} : memref<1x8xf32, #tpu.memory_space<vmem>>, vector<1x8xf32>,
      %c0_31 = arith.constant 0 : index
      %c0_32 = arith.constant 0 : index
      %41 = vector.load %arg5[%c0_31, %c0_32] : memref<1x8xf32, #tpu.memory_space<vmem>>, vector<1x8xf32>
      %42 = arith.mulf %27, %39 : vector<1x8xf32>
      %43 = arith.subf %41, %42 : vector<1x8xf32>
      %c0_33 = arith.constant 0 : index
      %c0_34 = arith.constant 0 : index
      %44 = vector.load %arg7[%c0_33, %c0_34] : memref<1x8xf32, #tpu.memory_space<vmem>>, vector<1x8xf32>
      tpu.vector_store %arg7[%c0_33, %c0_34], %43 {strides = array<i32>} : memref<1x8xf32, #tpu.memory_space<vmem>>, vector<1x8xf32>,
    } else {
    }
    return
  }
  func.func @transform_0(%arg0: i32) -> (i32, i32) {
    %c0_i32 = arith.constant 0 : i32
    %c0_i32_0 = arith.constant 0 : i32
    return %arg0, %c0_i32 : i32, i32
  }
  func.func @transform_1(%arg0: i32) -> (i32, i32) {
    %c0_i32 = arith.constant 0 : i32
    %c0_i32_0 = arith.constant 0 : i32
    %c0_i32_1 = arith.constant 0 : i32
    return %c0_i32, %c0_i32_0 : i32, i32
  }
  func.func @transform_2(%arg0: i32) -> (i32, i32) {
    %c0_i32 = arith.constant 0 : i32
    %c0_i32_0 = arith.constant 0 : i32
    %c0_i32_1 = arith.constant 0 : i32
    return %c0_i32, %c0_i32_0 : i32, i32
  }
  func.func @transform_3(%arg0: i32) -> (i32, i32) {
    %c0_i32 = arith.constant 0 : i32
    %c0_i32_0 = arith.constant 0 : i32
    %c0_i32_1 = arith.constant 0 : i32
    return %c0_i32, %c0_i32_0 : i32, i32
  }
  func.func @transform_4(%arg0: i32) -> (i32, i32) {
    %c0_i32 = arith.constant 0 : i32
    %c0_i32_0 = arith.constant 0 : i32
    %c0_i32_1 = arith.constant 0 : i32
    return %c0_i32, %c0_i32_0 : i32, i32
  }
  func.func @transform_5(%arg0: i32) -> (i32, i32) {
    %c0_i32 = arith.constant 0 : i32
    %c0_i32_0 = arith.constant 0 : i32
    %c0_i32_1 = arith.constant 0 : i32
    return %c0_i32, %c0_i32_0 : i32, i32
  }
  func.func @transform_6(%arg0: i32) -> (i32, i32) {
    %c0_i32 = arith.constant 0 : i32
    %c0_i32_0 = arith.constant 0 : i32
    %c0_i32_1 = arith.constant 0 : i32
    return %c0_i32, %c0_i32_0 : i32, i32
  }
}

</mosaic_0001>

<llo_original>
// kernel: tpu_custom_call.1
$region0: #{tpu_custom_call.1}
  #allocation0 [shape = 'u32[]', space=smem, size = 0x4, offset = 0x4, fixed_abs, tag = 'smem constant byte address 0x4 - core index']
  #allocation1 [shape = 'u32[72,128]{1,0:T(1,128)}', space=vmem, size = 0x9000, scoped, tag = 'internal scratch']
  #allocation2 [shape = 'f32[1,8]{1,0:T(1,128)}', space=vmem, size = 0x200, scoped, tag = 'scratch operand']
  #allocation3 [shape = 'f32[1,8]{1,0:T(1,128)}', space=vmem, size = 0x200, scoped, tag = 'scratch operand']
  %s0 = inlined_call_operand.vmem [shape: f32[512,4], index: 0, kind: input, shape index: {}]
  %s1 = inlined_call_operand.vmem [shape: f32[4,8], index: 1, kind: input, shape index: {}]
  %s2 = inlined_call_operand.vmem [shape: f32[1,8], index: 2, kind: input, shape index: {}]
  %s3 = inlined_call_operand.vmem [shape: f32[1,8], index: 3, kind: input, shape index: {}]
  %s4 = inlined_call_operand.vmem [shape: f32[1,8], index: 4, kind: input, shape index: {}]
  %s5 = inlined_call_operand.hbm [shape: f32[1,8], index: 5, kind: output, shape index: {0}]
  %s6 = inlined_call_operand.hbm [shape: f32[1,8], index: 6, kind: output, shape index: {1}]
  %7 = xla_tuple %s5, %s6
  %s8 = sld [smem:[#allocation0]]
  $region46: #{tpu_custom_call.1} parent=0
    _
  %s10 = ssub.s32 1, %s8
  %s11 = scalar_select 0, %s10, %s8
  $region1: #{tpu_custom_call.1} parent=0
    #allocation4 [shape = 'u8[512]{0}', space=vmem, size = 0x400, scoped, tag = 'output window, operand 0, single buffered']
    #allocation5 [shape = 's32[1]{0}', space=sflag, size = 0x4, scoped, tag = 'scoped memory for tpu_custom_call.1']
    #allocation6 [shape = 'u8[512]{0}', space=vmem, size = 0x400, scoped, tag = 'output window, operand 1, single buffered']
    #allocation7 [shape = 's32[1]{0}', space=sflag, size = 0x4, scoped, tag = 'scoped memory for tpu_custom_call.1']
    %12 = vsyncpa [#allocation5], 0
    %13 = vsyncpa [#allocation7], 0
    // Predicated region
    $region2: #{tpu_custom_call.1} parent=1 // pred_check
      _
    $region3: #{tpu_custom_call.1} parent=1 // pred_check_branch
      %15 = sbr.rel (0) target = $region5
    $region4: #{tpu_custom_call.1} parent=1 // pred_region
      _
    $region5: #{tpu_custom_call.1} parent=1 // pred_fallthru
      _
    // Predicated region
    $region6: #{tpu_custom_call.1} parent=1 // pred_check
      _
    $region7: #{tpu_custom_call.1} parent=1 // pred_check_branch
      %17 = sbr.rel (0) target = $region9
    $region8: #{tpu_custom_call.1} parent=1 // pred_region
      _
    $region9: #{tpu_custom_call.1} parent=1 // pred_fallthru
      _
    // Predicated region
    $region10: #{tpu_custom_call.1} parent=1 // pred_check
      _
    $region11: #{tpu_custom_call.1} parent=1 // pred_check_branch
      %19 = sbr.rel (0) target = $region13
    $region12: #{tpu_custom_call.1} parent=1 // pred_region
      _
    $region13: #{tpu_custom_call.1} parent=1 // pred_fallthru
      _
    // Predicated region
    $region14: #{tpu_custom_call.1} parent=1 // pred_check
      _
    $region15: #{tpu_custom_call.1} parent=1 // pred_check_branch
      %21 = sbr.rel (0) target = $region17
    $region16: #{tpu_custom_call.1} parent=1 // pred_region
      _
    $region17: #{tpu_custom_call.1} parent=1 // pred_fallthru
      _
    // Predicated region
    $region18: #{tpu_custom_call.1} parent=1 // pred_check
      _
    $region19: #{tpu_custom_call.1} parent=1 // pred_check_branch
      %23 = sbr.rel (0) target = $region21
    $region20: #{tpu_custom_call.1} parent=1 // pred_region
      _
    $region21: #{tpu_custom_call.1} parent=1 // pred_fallthru
      _
    %p24 = scmp.eq.s32.totalorder 0, 0
    // Predicated region
    $region22: #{tpu_custom_call.1} parent=1 // pred_check
      %p25 = pneg %p24
    $region23: #{tpu_custom_call.1} parent=1 // pred_check_branch
      %27 = sbr.rel (%p25) target = $region25
    $region24: #{tpu_custom_call.1} parent=1 // pred_region
      %vm28 = vcmask 57344
      %29 = vst.msk [vmem:[#allocation2] sm:$0x1] %vm28, 0.0
      %30 = vst.msk [vmem:[#allocation3] sm:$0x1] %vm28, 0.0
    $region25: #{tpu_custom_call.1} parent=1 // pred_fallthru
      _
    %v31 = vld [vmem:[%s0] sm:$0xff]
    %v32 = vld [vmem:[%s0 + $0x8] sm:$0xff]
    %v33 = vld [vmem:[%s0 + $0x10] sm:$0xff]
    %v34 = vld [vmem:[%s0 + $0x18] sm:$0xff]
    %v35 = vld [vmem:[%s0 + $0x20] sm:$0xff]
    %v36 = vld [vmem:[%s0 + $0x28] sm:$0xff]
    %v37 = vld [vmem:[%s0 + $0x30] sm:$0xff]
    %v38 = vld [vmem:[%s0 + $0x38] sm:$0xff]
    %v39 = vld [vmem:[%s0 + $0x40] sm:$0xff]
    %v40 = vld [vmem:[%s0 + $0x48] sm:$0xff]
    %v41 = vld [vmem:[%s0 + $0x50] sm:$0xff]
    %v42 = vld [vmem:[%s0 + $0x58] sm:$0xff]
    %v43 = vld [vmem:[%s0 + $0x60] sm:$0xff]
    %v44 = vld [vmem:[%s0 + $0x68] sm:$0xff]
    %v45 = vld [vmem:[%s0 + $0x70] sm:$0xff]
    %v46 = vld [vmem:[%s0 + $0x78] sm:$0xff]
    %v47 = vld [vmem:[%s0 + $0x80] sm:$0xff]
    %v48 = vld [vmem:[%s0 + $0x88] sm:$0xff]
    %v49 = vld [vmem:[%s0 + $0x90] sm:$0xff]
    %v50 = vld [vmem:[%s0 + $0x98] sm:$0xff]
    %v51 = vld [vmem:[%s0 + $0xa0] sm:$0xff]
    %v52 = vld [vmem:[%s0 + $0xa8] sm:$0xff]
    %v53 = vld [vmem:[%s0 + $0xb0] sm:$0xff]
    %v54 = vld [vmem:[%s0 + $0xb8] sm:$0xff]
    %v55 = vld [vmem:[%s0 + $0xc0] sm:$0xff]
    %v56 = vld [vmem:[%s0 + $0xc8] sm:$0xff]
    %v57 = vld [vmem:[%s0 + $0xd0] sm:$0xff]
    %v58 = vld [vmem:[%s0 + $0xd8] sm:$0xff]
    %v59 = vld [vmem:[%s0 + $0xe0] sm:$0xff]
    %v60 = vld [vmem:[%s0 + $0xe8] sm:$0xff]
    %v61 = vld [vmem:[%s0 + $0xf0] sm:$0xff]
    %v62 = vld [vmem:[%s0 + $0xf8] sm:$0xff]
    %v63 = vld [vmem:[%s0 + $0x100] sm:$0xff]
    %v64 = vld [vmem:[%s0 + $0x108] sm:$0xff]
    %v65 = vld [vmem:[%s0 + $0x110] sm:$0xff]
    %v66 = vld [vmem:[%s0 + $0x118] sm:$0xff]
    %v67 = vld [vmem:[%s0 + $0x120] sm:$0xff]
    %v68 = vld [vmem:[%s0 + $0x128] sm:$0xff]
    %v69 = vld [vmem:[%s0 + $0x130] sm:$0xff]
    %v70 = vld [vmem:[%s0 + $0x138] sm:$0xff]
    %v71 = vld [vmem:[%s0 + $0x140] sm:$0xff]
    %v72 = vld [vmem:[%s0 + $0x148] sm:$0xff]
    %v73 = vld [vmem:[%s0 + $0x150] sm:$0xff]
    %v74 = vld [vmem:[%s0 + $0x158] sm:$0xff]
    %v75 = vld [vmem:[%s0 + $0x160] sm:$0xff]
    %v76 = vld [vmem:[%s0 + $0x168] sm:$0xff]
    %v77 = vld [vmem:[%s0 + $0x170] sm:$0xff]
    %v78 = vld [vmem:[%s0 + $0x178] sm:$0xff]
    %v79 = vld [vmem:[%s0 + $0x180] sm:$0xff]
    %v80 = vld [vmem:[%s0 + $0x188] sm:$0xff]
    %v81 = vld [vmem:[%s0 + $0x190] sm:$0xff]
    %v82 = vld [vmem:[%s0 + $0x198] sm:$0xff]
    %v83 = vld [vmem:[%s0 + $0x1a0] sm:$0xff]
    %v84 = vld [vmem:[%s0 + $0x1a8] sm:$0xff]
    %v85 = vld [vmem:[%s0 + $0x1b0] sm:$0xff]
    %v86 = vld [vmem:[%s0 + $0x1b8] sm:$0xff]
    %v87 = vld [vmem:[%s0 + $0x1c0] sm:$0xff]
    %v88 = vld [vmem:[%s0 + $0x1c8] sm:$0xff]
    %v89 = vld [vmem:[%s0 + $0x1d0] sm:$0xff]
    %v90 = vld [vmem:[%s0 + $0x1d8] sm:$0xff]
    %v91 = vld [vmem:[%s0 + $0x1e0] sm:$0xff]
    %v92 = vld [vmem:[%s0 + $0x1e8] sm:$0xff]
    %v93 = vld [vmem:[%s0 + $0x1f0] sm:$0xff]
    %v94 = vld [vmem:[%s0 + $0x1f8] sm:$0xff]
    %v95 = vld [vmem:[%s1] sm:$0xf]
    %v96 = vld [vmem:[%s2] sm:$0x1]
    %v98 = vperm.slane %v96, 0
    %vm100 = vcmask 31744
    %v102 = vsel %vm100, %v31, 0
    %v105 = vsel %vm100, %v32, 0
    %v108 = vsel %vm100, %v33, 0
    %v111 = vsel %vm100, %v34, 0
    %v114 = vsel %vm100, %v35, 0
    %v117 = vsel %vm100, %v36, 0
    %v120 = vsel %vm100, %v37, 0
    %v123 = vsel %vm100, %v38, 0
    %v126 = vsel %vm100, %v39, 0
    %v129 = vsel %vm100, %v40, 0
    %v132 = vsel %vm100, %v41, 0
    %v135 = vsel %vm100, %v42, 0
    %v138 = vsel %vm100, %v43, 0
    %v141 = vsel %vm100, %v44, 0
    %v144 = vsel %vm100, %v45, 0
    %v147 = vsel %vm100, %v46, 0
    %v150 = vsel %vm100, %v47, 0
    %v153 = vsel %vm100, %v48, 0
    %v156 = vsel %vm100, %v49, 0
    %v159 = vsel %vm100, %v50, 0
    %v162 = vsel %vm100, %v51, 0
    %v165 = vsel %vm100, %v52, 0
    %v168 = vsel %vm100, %v53, 0
    %v171 = vsel %vm100, %v54, 0
    %v174 = vsel %vm100, %v55, 0
    %v177 = vsel %vm100, %v56, 0
    %v180 = vsel %vm100, %v57, 0
    %v183 = vsel %vm100, %v58, 0
    %v186 = vsel %vm100, %v59, 0
    %v189 = vsel %vm100, %v60, 0
    %v192 = vsel %vm100, %v61, 0
    %v195 = vsel %vm100, %v62, 0
    %v198 = vsel %vm100, %v63, 0
    %v201 = vsel %vm100, %v64, 0
    %v204 = vsel %vm100, %v65, 0
    %v207 = vsel %vm100, %v66, 0
    %v210 = vsel %vm100, %v67, 0
    %v213 = vsel %vm100, %v68, 0
    %v216 = vsel %vm100, %v69, 0
    %v219 = vsel %vm100, %v70, 0
    %v222 = vsel %vm100, %v71, 0
    %v225 = vsel %vm100, %v72, 0
    %v228 = vsel %vm100, %v73, 0
    %v231 = vsel %vm100, %v74, 0
    %v234 = vsel %vm100, %v75, 0
    %v237 = vsel %vm100, %v76, 0
    %v240 = vsel %vm100, %v77, 0
    %v243 = vsel %vm100, %v78, 0
    %v246 = vsel %vm100, %v79, 0
    %v249 = vsel %vm100, %v80, 0
    %v252 = vsel %vm100, %v81, 0
    %v255 = vsel %vm100, %v82, 0
    %v258 = vsel %vm100, %v83, 0
    %v261 = vsel %vm100, %v84, 0
    %v264 = vsel %vm100, %v85, 0
    %v267 = vsel %vm100, %v86, 0
    %v270 = vsel %vm100, %v87, 0
    %v273 = vsel %vm100, %v88, 0
    %v276 = vsel %vm100, %v89, 0
    %v279 = vsel %vm100, %v90, 0
    %v282 = vsel %vm100, %v91, 0
    %v285 = vsel %vm100, %v92, 0
    %v288 = vsel %vm100, %v93, 0
    %v291 = vsel %vm100, %v94, 0
    %vm293 = vcmask 1043456
    %v295 = vsel %vm293, %v95, 0
    %297 = vmatpush.msra.mxu0 0.0
    %298 = vmatpush.msra.mxu0 0.0
    %299 = vmatpush.msra.mxu0 0.0
    %300 = vmatpush.msra.mxu0 0.0
    %301 = vmatpush.msra.mxu0 0.0
    %302 = vmatpush.msra.mxu0 0.0
    %303 = vmatpush.msra.mxu0 0.0
    %304 = vmatpush.msra.mxu0 0.0
    %305 = vmatpush.msra.mxu0 0.0
    %306 = vmatpush.msra.mxu0 0.0
    %307 = vmatpush.msra.mxu0 0.0
    %308 = vmatpush.msra.mxu0 0.0
    %309 = vmatpush.msra.mxu0 0.0
    %310 = vmatpush.msra.mxu0 0.0
    %311 = vmatpush.msra.mxu0 0.0
    %312 = vmatpush.msra.mxu0 %v295
    %313 = vmatmul.f32.gmra.mxu0 %v102
    %v314 = vpop.f32.mrf.mxu0
    %v315 = vadd.f32 %v98, %v314
    %316 = vmatmul.f32.gmra.mxu0 %v105
    %v317 = vpop.f32.mrf.mxu0
    %v318 = vadd.f32 %v98, %v317
    %319 = vmatmul.f32.gmra.mxu0 %v108
    %v320 = vpop.f32.mrf.mxu0
    %v321 = vadd.f32 %v98, %v320
    %322 = vmatmul.f32.gmra.mxu0 %v111
    %v323 = vpop.f32.mrf.mxu0
    %v324 = vadd.f32 %v98, %v323
    %325 = vmatmul.f32.gmra.mxu0 %v114
    %v326 = vpop.f32.mrf.mxu0
    %v327 = vadd.f32 %v98, %v326
    %328 = vmatmul.f32.gmra.mxu0 %v117
    %v329 = vpop.f32.mrf.mxu0
    %v330 = vadd.f32 %v98, %v329
    %331 = vmatmul.f32.gmra.mxu0 %v120
    %v332 = vpop.f32.mrf.mxu0
    %v333 = vadd.f32 %v98, %v332
    %334 = vmatmul.f32.gmra.mxu0 %v123
    %v335 = vpop.f32.mrf.mxu0
    %v336 = vadd.f32 %v98, %v335
    %337 = vmatmul.f32.gmra.mxu0 %v126
    %v338 = vpop.f32.mrf.mxu0
    %v339 = vadd.f32 %v98, %v338
    %340 = vmatmul.f32.gmra.mxu0 %v129
    %v341 = vpop.f32.mrf.mxu0
    %v342 = vadd.f32 %v98, %v341
    %343 = vmatmul.f32.gmra.mxu0 %v132
    %v344 = vpop.f32.mrf.mxu0
    %v345 = vadd.f32 %v98, %v344
    %346 = vmatmul.f32.gmra.mxu0 %v135
    %v347 = vpop.f32.mrf.mxu0
    %v348 = vadd.f32 %v98, %v347
    %349 = vmatmul.f32.gmra.mxu0 %v138
    %v350 = vpop.f32.mrf.mxu0
    %v351 = vadd.f32 %v98, %v350
    %352 = vmatmul.f32.gmra.mxu0 %v141
    %v353 = vpop.f32.mrf.mxu0
    %v354 = vadd.f32 %v98, %v353
    %355 = vmatmul.f32.gmra.mxu0 %v144
    %v356 = vpop.f32.mrf.mxu0
    %v357 = vadd.f32 %v98, %v356
    %358 = vmatmul.f32.gmra.mxu0 %v147
    %v359 = vpop.f32.mrf.mxu0
    %v360 = vadd.f32 %v98, %v359
    %361 = vmatmul.f32.gmra.mxu0 %v150
    %v362 = vpop.f32.mrf.mxu0
    %v363 = vadd.f32 %v98, %v362
    %364 = vmatmul.f32.gmra.mxu0 %v153
    %v365 = vpop.f32.mrf.mxu0
    %v366 = vadd.f32 %v98, %v365
    %367 = vmatmul.f32.gmra.mxu0 %v156
    %v368 = vpop.f32.mrf.mxu0
    %v369 = vadd.f32 %v98, %v368
    %370 = vmatmul.f32.gmra.mxu0 %v159
    %v371 = vpop.f32.mrf.mxu0
    %v372 = vadd.f32 %v98, %v371
    %373 = vmatmul.f32.gmra.mxu0 %v162
    %v374 = vpop.f32.mrf.mxu0
    %v375 = vadd.f32 %v98, %v374
    %376 = vmatmul.f32.gmra.mxu0 %v165
    %v377 = vpop.f32.mrf.mxu0
    %v378 = vadd.f32 %v98, %v377
    %379 = vmatmul.f32.gmra.mxu0 %v168
    %v380 = vpop.f32.mrf.mxu0
    %v381 = vadd.f32 %v98, %v380
    %382 = vmatmul.f32.gmra.mxu0 %v171
    %v383 = vpop.f32.mrf.mxu0
    %v384 = vadd.f32 %v98, %v383
    %385 = vmatmul.f32.gmra.mxu0 %v174
    %v386 = vpop.f32.mrf.mxu0
    %v387 = vadd.f32 %v98, %v386
    %388 = vmatmul.f32.gmra.mxu0 %v177
    %v389 = vpop.f32.mrf.mxu0
    %v390 = vadd.f32 %v98, %v389
    %391 = vmatmul.f32.gmra.mxu0 %v180
    %v392 = vpop.f32.mrf.mxu0
    %v393 = vadd.f32 %v98, %v392
    %394 = vmatmul.f32.gmra.mxu0 %v183
    %v395 = vpop.f32.mrf.mxu0
    %v396 = vadd.f32 %v98, %v395
    %397 = vmatmul.f32.gmra.mxu0 %v186
    %v398 = vpop.f32.mrf.mxu0
    %v399 = vadd.f32 %v98, %v398
    %400 = vmatmul.f32.gmra.mxu0 %v189
    %v401 = vpop.f32.mrf.mxu0
    %v402 = vadd.f32 %v98, %v401
    %403 = vmatmul.f32.gmra.mxu0 %v192
    %v404 = vpop.f32.mrf.mxu0
    %v405 = vadd.f32 %v98, %v404
    %406 = vmatmul.f32.gmra.mxu0 %v195
    %v407 = vpop.f32.mrf.mxu0
    %v408 = vadd.f32 %v98, %v407
    %409 = vmatmul.f32.gmra.mxu0 %v198
    %v410 = vpop.f32.mrf.mxu0
    %v411 = vadd.f32 %v98, %v410
    %412 = vmatmul.f32.gmra.mxu0 %v201
    %v413 = vpop.f32.mrf.mxu0
    %v414 = vadd.f32 %v98, %v413
    %415 = vmatmul.f32.gmra.mxu0 %v204
    %v416 = vpop.f32.mrf.mxu0
    %v417 = vadd.f32 %v98, %v416
    %418 = vmatmul.f32.gmra.mxu0 %v207
    %v419 = vpop.f32.mrf.mxu0
    %v420 = vadd.f32 %v98, %v419
    %421 = vmatmul.f32.gmra.mxu0 %v210
    %v422 = vpop.f32.mrf.mxu0
    %v423 = vadd.f32 %v98, %v422
    %424 = vmatmul.f32.gmra.mxu0 %v213
    %v425 = vpop.f32.mrf.mxu0
    %v426 = vadd.f32 %v98, %v425
    %427 = vmatmul.f32.gmra.mxu0 %v216
    %v428 = vpop.f32.mrf.mxu0
    %v429 = vadd.f32 %v98, %v428
    %430 = vmatmul.f32.gmra.mxu0 %v219
    %v431 = vpop.f32.mrf.mxu0
    %v432 = vadd.f32 %v98, %v431
    %433 = vmatmul.f32.gmra.mxu0 %v222
    %v434 = vpop.f32.mrf.mxu0
    %v435 = vadd.f32 %v98, %v434
    %436 = vmatmul.f32.gmra.mxu0 %v225
    %v437 = vpop.f32.mrf.mxu0
    %v438 = vadd.f32 %v98, %v437
    %439 = vmatmul.f32.gmra.mxu0 %v228
    %v440 = vpop.f32.mrf.mxu0
    %v441 = vadd.f32 %v98, %v440
    %442 = vmatmul.f32.gmra.mxu0 %v231
    %v443 = vpop.f32.mrf.mxu0
    %v444 = vadd.f32 %v98, %v443
    %445 = vmatmul.f32.gmra.mxu0 %v234
    %v446 = vpop.f32.mrf.mxu0
    %v447 = vadd.f32 %v98, %v446
    %448 = vmatmul.f32.gmra.mxu0 %v237
    %v449 = vpop.f32.mrf.mxu0
    %v450 = vadd.f32 %v98, %v449
    %451 = vmatmul.f32.gmra.mxu0 %v240
    %v452 = vpop.f32.mrf.mxu0
    %v453 = vadd.f32 %v98, %v452
    %454 = vmatmul.f32.gmra.mxu0 %v243
    %v455 = vpop.f32.mrf.mxu0
    %v456 = vadd.f32 %v98, %v455
    %457 = vmatmul.f32.gmra.mxu0 %v246
    %v458 = vpop.f32.mrf.mxu0
    %v459 = vadd.f32 %v98, %v458
    %460 = vmatmul.f32.gmra.mxu0 %v249
    %v461 = vpop.f32.mrf.mxu0
    %v462 = vadd.f32 %v98, %v461
    %463 = vmatmul.f32.gmra.mxu0 %v252
    %v464 = vpop.f32.mrf.mxu0
    %v465 = vadd.f32 %v98, %v464
    %466 = vmatmul.f32.gmra.mxu0 %v255
    %v467 = vpop.f32.mrf.mxu0
    %v468 = vadd.f32 %v98, %v467
    %469 = vmatmul.f32.gmra.mxu0 %v258
    %v470 = vpop.f32.mrf.mxu0
    %v471 = vadd.f32 %v98, %v470
    %472 = vmatmul.f32.gmra.mxu0 %v261
    %v473 = vpop.f32.mrf.mxu0
    %v474 = vadd.f32 %v98, %v473
    %475 = vmatmul.f32.gmra.mxu0 %v264
    %v476 = vpop.f32.mrf.mxu0
    %v477 = vadd.f32 %v98, %v476
    %478 = vmatmul.f32.gmra.mxu0 %v267
    %v479 = vpop.f32.mrf.mxu0
    %v480 = vadd.f32 %v98, %v479
    %481 = vmatmul.f32.gmra.mxu0 %v270
    %v482 = vpop.f32.mrf.mxu0
    %v483 = vadd.f32 %v98, %v482
    %484 = vmatmul.f32.gmra.mxu0 %v273
    %v485 = vpop.f32.mrf.mxu0
    %v486 = vadd.f32 %v98, %v485
    %487 = vmatmul.f32.gmra.mxu0 %v276
    %v488 = vpop.f32.mrf.mxu0
    %v489 = vadd.f32 %v98, %v488
    %490 = vmatmul.f32.gmra.mxu0 %v279
    %v491 = vpop.f32.mrf.mxu0
    %v492 = vadd.f32 %v98, %v491
    %493 = vmatmul.f32.gmra.mxu0 %v282
    %v494 = vpop.f32.mrf.mxu0
    %v495 = vadd.f32 %v98, %v494
    %496 = vmatmul.f32.gmra.mxu0 %v285
    %v497 = vpop.f32.mrf.mxu0
    %v498 = vadd.f32 %v98, %v497
    %499 = vmatmul.f32.gmra.mxu0 %v288
    %v500 = vpop.f32.mrf.mxu0
    %v501 = vadd.f32 %v98, %v500
    %502 = vmatmul.f32.gmra.mxu0 %v291
    %v503 = vpop.f32.mrf.mxu0
    %v504 = vadd.f32 %v98, %v503
    %505 = vdwg.mxu0
    %v506 = vmax.f32 %v315, 0.0
    %v507 = vmax.f32 %v318, 0.0
    %v508 = vmax.f32 %v321, 0.0
    %v509 = vmax.f32 %v324, 0.0
    %v510 = vmax.f32 %v327, 0.0
    %v511 = vmax.f32 %v330, 0.0
    %v512 = vmax.f32 %v333, 0.0
    %v513 = vmax.f32 %v336, 0.0
    %v514 = vmax.f32 %v339, 0.0
    %v515 = vmax.f32 %v342, 0.0
    %v516 = vmax.f32 %v345, 0.0
    %v517 = vmax.f32 %v348, 0.0
    %v518 = vmax.f32 %v351, 0.0
    %v519 = vmax.f32 %v354, 0.0
    %v520 = vmax.f32 %v357, 0.0
    %v521 = vmax.f32 %v360, 0.0
    %v522 = vmax.f32 %v363, 0.0
    %v523 = vmax.f32 %v366, 0.0
    %v524 = vmax.f32 %v369, 0.0
    %v525 = vmax.f32 %v372, 0.0
    %v526 = vmax.f32 %v375, 0.0
    %v527 = vmax.f32 %v378, 0.0
    %v528 = vmax.f32 %v381, 0.0
    %v529 = vmax.f32 %v384, 0.0
    %v530 = vmax.f32 %v387, 0.0
    %v531 = vmax.f32 %v390, 0.0
    %v532 = vmax.f32 %v393, 0.0
    %v533 = vmax.f32 %v396, 0.0
    %v534 = vmax.f32 %v399, 0.0
    %v535 = vmax.f32 %v402, 0.0
    %v536 = vmax.f32 %v405, 0.0
    %v537 = vmax.f32 %v408, 0.0
    %v538 = vmax.f32 %v411, 0.0
    %v539 = vmax.f32 %v414, 0.0
    %v540 = vmax.f32 %v417, 0.0
    %v541 = vmax.f32 %v420, 0.0
    %v542 = vmax.f32 %v423, 0.0
    %v543 = vmax.f32 %v426, 0.0
    %v544 = vmax.f32 %v429, 0.0
    %v545 = vmax.f32 %v432, 0.0
    %v546 = vmax.f32 %v435, 0.0
    %v547 = vmax.f32 %v438, 0.0
    %v548 = vmax.f32 %v441, 0.0
    %v549 = vmax.f32 %v444, 0.0
    %v550 = vmax.f32 %v447, 0.0
    %v551 = vmax.f32 %v450, 0.0
    %v552 = vmax.f32 %v453, 0.0
    %v553 = vmax.f32 %v456, 0.0
    %v554 = vmax.f32 %v459, 0.0
    %v555 = vmax.f32 %v462, 0.0
    %v556 = vmax.f32 %v465, 0.0
    %v557 = vmax.f32 %v468, 0.0
    %v558 = vmax.f32 %v471, 0.0
    %v559 = vmax.f32 %v474, 0.0
    %v560 = vmax.f32 %v477, 0.0
    %v561 = vmax.f32 %v480, 0.0
    %v562 = vmax.f32 %v483, 0.0
    %v563 = vmax.f32 %v486, 0.0
    %v564 = vmax.f32 %v489, 0.0
    %v565 = vmax.f32 %v492, 0.0
    %v566 = vmax.f32 %v495, 0.0
    %v567 = vmax.f32 %v498, 0.0
    %v568 = vmax.f32 %v501, 0.0
    %v569 = vmax.f32 %v504, 0.0
    %v570 = vld [vmem:[#allocation2] sm:$0x1]
    %vm571 = vcmask 64512
    %v572 = vsel %vm571, %v506, 0.0
    %v573 = vsel %vm571, %v507, 0.0
    %v574 = vadd.f32 %v572, %v573
    %v575 = vsel %vm571, %v508, 0.0
    %v576 = vadd.f32 %v574, %v575
    %v577 = vsel %vm571, %v509, 0.0
    %v578 = vadd.f32 %v576, %v577
    %v579 = vsel %vm571, %v510, 0.0
    %v580 = vadd.f32 %v578, %v579
    %v581 = vsel %vm571, %v511, 0.0
    %v582 = vadd.f32 %v580, %v581
    %v583 = vsel %vm571, %v512, 0.0
    %v584 = vadd.f32 %v582, %v583
    %v585 = vsel %vm571, %v513, 0.0
    %v586 = vadd.f32 %v584, %v585
    %v587 = vsel %vm571, %v514, 0.0
    %v588 = vadd.f32 %v586, %v587
    %v589 = vsel %vm571, %v515, 0.0
    %v590 = vadd.f32 %v588, %v589
    %v591 = vsel %vm571, %v516, 0.0
    %v592 = vadd.f32 %v590, %v591
    %v593 = vsel %vm571, %v517, 0.0
    %v594 = vadd.f32 %v592, %v593
    %v595 = vsel %vm571, %v518, 0.0
    %v596 = vadd.f32 %v594, %v595
    %v597 = vsel %vm571, %v519, 0.0
    %v598 = vadd.f32 %v596, %v597
    %v599 = vsel %vm571, %v520, 0.0
    %v600 = vadd.f32 %v598, %v599
    %v601 = vsel %vm571, %v521, 0.0
    %v602 = vadd.f32 %v600, %v601
    %v603 = vsel %vm571, %v522, 0.0
    %v604 = vadd.f32 %v602, %v603
    %v605 = vsel %vm571, %v523, 0.0
    %v606 = vadd.f32 %v604, %v605
    %v607 = vsel %vm571, %v524, 0.0
    %v608 = vadd.f32 %v606, %v607
    %v609 = vsel %vm571, %v525, 0.0
    %v610 = vadd.f32 %v608, %v609
    %v611 = vsel %vm571, %v526, 0.0
    %v612 = vadd.f32 %v610, %v611
    %v613 = vsel %vm571, %v527, 0.0
    %v614 = vadd.f32 %v612, %v613
    %v615 = vsel %vm571, %v528, 0.0
    %v616 = vadd.f32 %v614, %v615
    %v617 = vsel %vm571, %v529, 0.0
    %v618 = vadd.f32 %v616, %v617
    %v619 = vsel %vm571, %v530, 0.0
    %v620 = vadd.f32 %v618, %v619
    %v621 = vsel %vm571, %v531, 0.0
    %v622 = vadd.f32 %v620, %v621
    %v623 = vsel %vm571, %v532, 0.0
    %v624 = vadd.f32 %v622, %v623
    %v625 = vsel %vm571, %v533, 0.0
    %v626 = vadd.f32 %v624, %v625
    %v627 = vsel %vm571, %v534, 0.0
    %v628 = vadd.f32 %v626, %v627
    %v629 = vsel %vm571, %v535, 0.0
    %v630 = vadd.f32 %v628, %v629
    %v631 = vsel %vm571, %v536, 0.0
    %v632 = vadd.f32 %v630, %v631
    %v633 = vsel %vm571, %v537, 0.0
    %v634 = vadd.f32 %v632, %v633
    %v635 = vsel %vm571, %v538, 0.0
    %v636 = vadd.f32 %v634, %v635
    %v637 = vsel %vm571, %v539, 0.0
    %v638 = vadd.f32 %v636, %v637
    %v639 = vsel %vm571, %v540, 0.0
    %v640 = vadd.f32 %v638, %v639
    %v641 = vsel %vm571, %v541, 0.0
    %v642 = vadd.f32 %v640, %v641
    %v643 = vsel %vm571, %v542, 0.0
    %v644 = vadd.f32 %v642, %v643
    %v645 = vsel %vm571, %v543, 0.0
    %v646 = vadd.f32 %v644, %v645
    %v647 = vsel %vm571, %v544, 0.0
    %v648 = vadd.f32 %v646, %v647
    %v649 = vsel %vm571, %v545, 0.0
    %v650 = vadd.f32 %v648, %v649
    %v651 = vsel %vm571, %v546, 0.0
    %v652 = vadd.f32 %v650, %v651
    %v653 = vsel %vm571, %v547, 0.0
    %v654 = vadd.f32 %v652, %v653
    %v655 = vsel %vm571, %v548, 0.0
    %v656 = vadd.f32 %v654, %v655
    %v657 = vsel %vm571, %v549, 0.0
    %v658 = vadd.f32 %v656, %v657
    %v659 = vsel %vm571, %v550, 0.0
    %v660 = vadd.f32 %v658, %v659
    %v661 = vsel %vm571, %v551, 0.0
    %v662 = vadd.f32 %v660, %v661
    %v663 = vsel %vm571, %v552, 0.0
    %v664 = vadd.f32 %v662, %v663
    %v665 = vsel %vm571, %v553, 0.0
    %v666 = vadd.f32 %v664, %v665
    %v667 = vsel %vm571, %v554, 0.0
    %v668 = vadd.f32 %v666, %v667
    %v669 = vsel %vm571, %v555, 0.0
    %v670 = vadd.f32 %v668, %v669
    %v671 = vsel %vm571, %v556, 0.0
    %v672 = vadd.f32 %v670, %v671
    %v673 = vsel %vm571, %v557, 0.0
    %v674 = vadd.f32 %v672, %v673
    %v675 = vsel %vm571, %v558, 0.0
    %v676 = vadd.f32 %v674, %v675
    %v677 = vsel %vm571, %v559, 0.0
    %v678 = vadd.f32 %v676, %v677
    %v679 = vsel %vm571, %v560, 0.0
    %v680 = vadd.f32 %v678, %v679
    %v681 = vsel %vm571, %v561, 0.0
    %v682 = vadd.f32 %v680, %v681
    %v683 = vsel %vm571, %v562, 0.0
    %v684 = vadd.f32 %v682, %v683
    %v685 = vsel %vm571, %v563, 0.0
    %v686 = vadd.f32 %v684, %v685
    %v687 = vsel %vm571, %v564, 0.0
    %v688 = vadd.f32 %v686, %v687
    %v689 = vsel %vm571, %v565, 0.0
    %v690 = vadd.f32 %v688, %v689
    %v691 = vsel %vm571, %v566, 0.0
    %v692 = vadd.f32 %v690, %v691
    %v693 = vsel %vm571, %v567, 0.0
    %v694 = vadd.f32 %v692, %v693
    %v695 = vsel %vm571, %v568, 0.0
    %v696 = vadd.f32 %v694, %v695
    %v697 = vsel %vm571, %v569, 0.0
    %v698 = vadd.f32 %v696, %v697
    %v699 = vrot.slane %v698, 4
    %v700 = vadd.f32 %v698, %v699
    %v701 = vrot.slane %v700, 2
    %v702 = vadd.f32 %v700, %v701
    %v703 = vrot.slane %v702, 1
    %v704 = vadd.f32 %v702, %v703
    %v705 = vadd.f32 %v570, %v704
    %vm706 = vcmask 57344
    %707 = vst.msk [vmem:[#allocation2] sm:$0x1] %vm706, %v705
    %v708 = vld [vmem:[#allocation3] sm:$0x1]
    %v709 = vmul.f32 %v506, %v506
    %v710 = vmul.f32 %v507, %v507
    %v711 = vmul.f32 %v508, %v508
    %v712 = vmul.f32 %v509, %v509
    %v713 = vmul.f32 %v510, %v510
    %v714 = vmul.f32 %v511, %v511
    %v715 = vmul.f32 %v512, %v512
    %v716 = vmul.f32 %v513, %v513
    %v717 = vmul.f32 %v514, %v514
    %v718 = vmul.f32 %v515, %v515
    %v719 = vmul.f32 %v516, %v516
    %v720 = vmul.f32 %v517, %v517
    %v721 = vmul.f32 %v518, %v518
    %v722 = vmul.f32 %v519, %v519
    %v723 = vmul.f32 %v520, %v520
    %v724 = vmul.f32 %v521, %v521
    %v725 = vmul.f32 %v522, %v522
    %v726 = vmul.f32 %v523, %v523
    %v727 = vmul.f32 %v524, %v524
    %v728 = vmul.f32 %v525, %v525
    %v729 = vmul.f32 %v526, %v526
    %v730 = vmul.f32 %v527, %v527
    %v731 = vmul.f32 %v528, %v528
    %v732 = vmul.f32 %v529, %v529
    %v733 = vmul.f32 %v530, %v530
    %v734 = vmul.f32 %v531, %v531
    %v735 = vmul.f32 %v532, %v532
    %v736 = vmul.f32 %v533, %v533
    %v737 = vmul.f32 %v534, %v534
    %v738 = vmul.f32 %v535, %v535
    %v739 = vmul.f32 %v536, %v536
    %v740 = vmul.f32 %v537, %v537
    %v741 = vmul.f32 %v538, %v538
    %v742 = vmul.f32 %v539, %v539
    %v743 = vmul.f32 %v540, %v540
    %v744 = vmul.f32 %v541, %v541
    %v745 = vmul.f32 %v542, %v542
    %v746 = vmul.f32 %v543, %v543
    %v747 = vmul.f32 %v544, %v544
    %v748 = vmul.f32 %v545, %v545
    %v749 = vmul.f32 %v546, %v546
    %v750 = vmul.f32 %v547, %v547
    %v751 = vmul.f32 %v548, %v548
    %v752 = vmul.f32 %v549, %v549
    %v753 = vmul.f32 %v550, %v550
    %v754 = vmul.f32 %v551, %v551
    %v755 = vmul.f32 %v552, %v552
    %v756 = vmul.f32 %v553, %v553
    %v757 = vmul.f32 %v554, %v554
    %v758 = vmul.f32 %v555, %v555
    %v759 = vmul.f32 %v556, %v556
    %v760 = vmul.f32 %v557, %v557
    %v761 = vmul.f32 %v558, %v558
    %v762 = vmul.f32 %v559, %v559
    %v763 = vmul.f32 %v560, %v560
    %v764 = vmul.f32 %v561, %v561
    %v765 = vmul.f32 %v562, %v562
    %v766 = vmul.f32 %v563, %v563
    %v767 = vmul.f32 %v564, %v564
    %v768 = vmul.f32 %v565, %v565
    %v769 = vmul.f32 %v566, %v566
    %v770 = vmul.f32 %v567, %v567
    %v771 = vmul.f32 %v568, %v568
    %v772 = vmul.f32 %v569, %v569
    %v773 = vsel %vm571, %v709, 0.0
    %v774 = vsel %vm571, %v710, 0.0
    %v775 = vadd.f32 %v773, %v774
    %v776 = vsel %vm571, %v711, 0.0
    %v777 = vadd.f32 %v775, %v776
    %v778 = vsel %vm571, %v712, 0.0
    %v779 = vadd.f32 %v777, %v778
    %v780 = vsel %vm571, %v713, 0.0
    %v781 = vadd.f32 %v779, %v780
    %v782 = vsel %vm571, %v714, 0.0
    %v783 = vadd.f32 %v781, %v782
    %v784 = vsel %vm571, %v715, 0.0
    %v785 = vadd.f32 %v783, %v784
    %v786 = vsel %vm571, %v716, 0.0
    %v787 = vadd.f32 %v785, %v786
    %v788 = vsel %vm571, %v717, 0.0
    %v789 = vadd.f32 %v787, %v788
    %v790 = vsel %vm571, %v718, 0.0
    %v791 = vadd.f32 %v789, %v790
    %v792 = vsel %vm571, %v719, 0.0
    %v793 = vadd.f32 %v791, %v792
    %v794 = vsel %vm571, %v720, 0.0
    %v795 = vadd.f32 %v793, %v794
    %v796 = vsel %vm571, %v721, 0.0
    %v797 = vadd.f32 %v795, %v796
    %v798 = vsel %vm571, %v722, 0.0
    %v799 = vadd.f32 %v797, %v798
    %v800 = vsel %vm571, %v723, 0.0
    %v801 = vadd.f32 %v799, %v800
    %v802 = vsel %vm571, %v724, 0.0
    %v803 = vadd.f32 %v801, %v802
    %v804 = vsel %vm571, %v725, 0.0
    %v805 = vadd.f32 %v803, %v804
    %v806 = vsel %vm571, %v726, 0.0
    %v807 = vadd.f32 %v805, %v806
    %v808 = vsel %vm571, %v727, 0.0
    %v809 = vadd.f32 %v807, %v808
    %v810 = vsel %vm571, %v728, 0.0
    %v811 = vadd.f32 %v809, %v810
    %v812 = vsel %vm571, %v729, 0.0
    %v813 = vadd.f32 %v811, %v812
    %v814 = vsel %vm571, %v730, 0.0
    %v815 = vadd.f32 %v813, %v814
    %v816 = vsel %vm571, %v731, 0.0
    %v817 = vadd.f32 %v815, %v816
    %v818 = vsel %vm571, %v732, 0.0
    %v819 = vadd.f32 %v817, %v818
    %v820 = vsel %vm571, %v733, 0.0
    %v821 = vadd.f32 %v819, %v820
    %v822 = vsel %vm571, %v734, 0.0
    %v823 = vadd.f32 %v821, %v822
    %v824 = vsel %vm571, %v735, 0.0
    %v825 = vadd.f32 %v823, %v824
    %v826 = vsel %vm571, %v736, 0.0
    %v827 = vadd.f32 %v825, %v826
    %v828 = vsel %vm571, %v737, 0.0
    %v829 = vadd.f32 %v827, %v828
    %v830 = vsel %vm571, %v738, 0.0
    %v831 = vadd.f32 %v829, %v830
    %v832 = vsel %vm571, %v739, 0.0
    %v833 = vadd.f32 %v831, %v832
    %v834 = vsel %vm571, %v740, 0.0
    %v835 = vadd.f32 %v833, %v834
    %v836 = vsel %vm571, %v741, 0.0
    %v837 = vadd.f32 %v835, %v836
    %v838 = vsel %vm571, %v742, 0.0
    %v839 = vadd.f32 %v837, %v838
    %v840 = vsel %vm571, %v743, 0.0
    %v841 = vadd.f32 %v839, %v840
    %v842 = vsel %vm571, %v744, 0.0
    %v843 = vadd.f32 %v841, %v842
    %v844 = vsel %vm571, %v745, 0.0
    %v845 = vadd.f32 %v843, %v844
    %v846 = vsel %vm571, %v746, 0.0
    %v847 = vadd.f32 %v845, %v846
    %v848 = vsel %vm571, %v747, 0.0
    %v849 = vadd.f32 %v847, %v848
    %v850 = vsel %vm571, %v748, 0.0
    %v851 = vadd.f32 %v849, %v850
    %v852 = vsel %vm571, %v749, 0.0
    %v853 = vadd.f32 %v851, %v852
    %v854 = vsel %vm571, %v750, 0.0
    %v855 = vadd.f32 %v853, %v854
    %v856 = vsel %vm571, %v751, 0.0
    %v857 = vadd.f32 %v855, %v856
    %v858 = vsel %vm571, %v752, 0.0
    %v859 = vadd.f32 %v857, %v858
    %v860 = vsel %vm571, %v753, 0.0
    %v861 = vadd.f32 %v859, %v860
    %v862 = vsel %vm571, %v754, 0.0
    %v863 = vadd.f32 %v861, %v862
    %v864 = vsel %vm571, %v755, 0.0
    %v865 = vadd.f32 %v863, %v864
    %v866 = vsel %vm571, %v756, 0.0
    %v867 = vadd.f32 %v865, %v866
    %v868 = vsel %vm571, %v757, 0.0
    %v869 = vadd.f32 %v867, %v868
    %v870 = vsel %vm571, %v758, 0.0
    %v871 = vadd.f32 %v869, %v870
    %v872 = vsel %vm571, %v759, 0.0
    %v873 = vadd.f32 %v871, %v872
    %v874 = vsel %vm571, %v760, 0.0
    %v875 = vadd.f32 %v873, %v874
    %v876 = vsel %vm571, %v761, 0.0
    %v877 = vadd.f32 %v875, %v876
    %v878 = vsel %vm571, %v762, 0.0
    %v879 = vadd.f32 %v877, %v878
    %v880 = vsel %vm571, %v763, 0.0
    %v881 = vadd.f32 %v879, %v880
    %v882 = vsel %vm571, %v764, 0.0
    %v883 = vadd.f32 %v881, %v882
    %v884 = vsel %vm571, %v765, 0.0
    %v885 = vadd.f32 %v883, %v884
    %v886 = vsel %vm571, %v766, 0.0
    %v887 = vadd.f32 %v885, %v886
    %v888 = vsel %vm571, %v767, 0.0
    %v889 = vadd.f32 %v887, %v888
    %v890 = vsel %vm571, %v768, 0.0
    %v891 = vadd.f32 %v889, %v890
    %v892 = vsel %vm571, %v769, 0.0
    %v893 = vadd.f32 %v891, %v892
    %v894 = vsel %vm571, %v770, 0.0
    %v895 = vadd.f32 %v893, %v894
    %v896 = vsel %vm571, %v771, 0.0
    %v897 = vadd.f32 %v895, %v896
    %v898 = vsel %vm571, %v772, 0.0
    %v899 = vadd.f32 %v897, %v898
    %v900 = vrot.slane %v899, 4
    %v901 = vadd.f32 %v899, %v900
    %v902 = vrot.slane %v901, 2
    %v903 = vadd.f32 %v901, %v902
    %v904 = vrot.slane %v903, 1
    %v905 = vadd.f32 %v903, %v904
    %v906 = vadd.f32 %v708, %v905
    %907 = vst.msk [vmem:[#allocation3] sm:$0x1] %vm706, %v906
    // Predicated region
    $region26: #{tpu_custom_call.1} parent=1 // pred_check
      %p908 = pneg %p24
    $region27: #{tpu_custom_call.1} parent=1 // pred_check_branch
      %910 = sbr.rel (%p908) target = $region29
    $region28: #{tpu_custom_call.1} parent=1 // pred_region
      %v911 = vld [vmem:[#allocation2] sm:$0x1]
      %v912 = vmul.f32 %v911, 0.001953125
      %v913 = vld [vmem:[#allocation3] sm:$0x1]
      %v914 = vmul.f32 %v913, 0.001953125
      %v915 = vmul.f32 %v912, %v912
      %v916 = vsub.f32 %v914, %v915
      %v917 = vmax.f32 %v916, 0.0
      %v918 = vld [vmem:[%s3] sm:$0x1]
      %v919 = vadd.f32 %v917, 1e-05
      %v920 = vrsqrt.pop %v919
      %v921 = vmul.f32 %v920, %v919
      %v922 = vmul.f32 %v921, %v920
      %v923 = vmul.f32 0.5, %v922
      %v924 = vsub.f32 1.5, %v923
      %v925 = vmul.f32 %v920, %v924
      %vm926 = vweird.f32 %v919
      %vm927 = vweird.f32 %v920
      %vm928 = vmor %vm926, %vm927
      %v929 = vsel %vm928, %v920, %v925
      %v930 = vmul.f32 %v918, %v929
      %931 = vst.msk [vmem:[#allocation4] sm:$0x1] %vm706, %v930
      %v932 = vld [vmem:[%s4] sm:$0x1]
      %v933 = vmul.f32 %v912, %v930
      %v934 = vsub.f32 %v932, %v933
      %935 = vst.msk [vmem:[#allocation6] sm:$0x1] %vm706, %v934
    $region29: #{tpu_custom_call.1} parent=1 // pred_fallthru
      _
    // Predicated region
    $region30: #{tpu_custom_call.1} parent=1 // pred_check
      _
    $region31: #{tpu_custom_call.1} parent=1 // pred_check_branch
      %937 = sbr.rel (0) target = $region33
    $region32: #{tpu_custom_call.1} parent=1 // pred_region
      %939 = vsyncadd [#allocation5], 0
      %s941 = sshll.u32 [#allocation4], 4
      %s942 = int_to_ptr.vmem [resolvable:$true] %s941
      %s943 = sshll.u32 %s5, 4
      %s944 = int_to_ptr.hbm [resolvable:$true] %s943
      %946 = dma.vmem_to_hbm [thread:$0]  %s942, 16, %s944, [#allocation5]
    $region33: #{tpu_custom_call.1} parent=1 // pred_fallthru
      _
    // Predicated region
    $region34: #{tpu_custom_call.1} parent=1 // pred_check
      _
    $region35: #{tpu_custom_call.1} parent=1 // pred_check_branch
      %948 = sbr.rel (0) target = $region37
    $region36: #{tpu_custom_call.1} parent=1 // pred_region
      %950 = vsyncadd [#allocation7], 0
      %s952 = sshll.u32 [#allocation6], 4
      %s953 = int_to_ptr.vmem [resolvable:$true] %s952
      %s954 = sshll.u32 %s6, 4
      %s955 = int_to_ptr.hbm [resolvable:$true] %s954
      %957 = dma.vmem_to_hbm [thread:$0]  %s953, 16, %s955, [#allocation7]
    $region37: #{tpu_custom_call.1} parent=1 // pred_fallthru
      _
    // Predicated region
    $region38: #{tpu_custom_call.1} parent=1 // pred_check
      _
    $region39: #{tpu_custom_call.1} parent=1 // pred_check_branch
      %959 = sbr.rel (0) target = $region41
    $region40: #{tpu_custom_call.1} parent=1 // pred_region
      %961 = dma.done [#allocation5], 16
    $region41: #{tpu_custom_call.1} parent=1 // pred_fallthru
      _
    // Predicated region
    $region42: #{tpu_custom_call.1} parent=1 // pred_check
      _
    $region43: #{tpu_custom_call.1} parent=1 // pred_check_branch
      %963 = sbr.rel (0) target = $region45
    $region44: #{tpu_custom_call.1} parent=1 // pred_region
      %965 = dma.done [#allocation7], 16
    $region45: #{tpu_custom_call.1} parent=1 // pred_fallthru
      _
    %966 = vsyncpa [#allocation5], 1
    %967 = vsyncpa [#allocation7], 1

</llo_original>
